<compile_context>
chip_gen: v5e
topology: v5e:2x2
jax: 0.10.0
libtpu: 0.0.40
codegen_flags: <defaults>
</compile_context>

<pallas_src>
import functools
from typing import NamedTuple

import jax
import jax.numpy as jnp
from jax.experimental import pallas as pl
from jax.experimental.pallas import tpu as pltpu

_LANES = 128
_SUBLANES = 8


def _round_up(x, m):
    return (x + m - 1) // m * m


class CrossParams(NamedTuple):
    """Pre-packed Cross_Model parameters (build once at init time)."""
    w_packed: jax.Array   # (L, Kp, Kp)  packed W^T (in, out layout), matmul dtype
    b_packed: jax.Array   # (L, Kp)      packed biases, f32
    K: int                # original feature width
    fold: int             # batch rows folded into the lane dim (Kp // K), else 1


def prepare_cross_params(weights_t, biases, *, matmul_dtype=jnp.bfloat16):
    """One-time packing of parameters.

    weights_t: (L, K_in, K_out) — i.e. torch Linear weight transposed.
    biases:    (L, K).
    Small K (dividing 128): block-diagonal 128x128 weights so `fold` batch rows can
    share one lane row. Otherwise: zero-pad K up to a multiple of 128.
    """
    L, K, _ = weights_t.shape
    if K < _LANES and _LANES % K == 0:
        fold = _LANES // K
        Kp = _LANES
        eye = jnp.eye(fold, dtype=weights_t.dtype)
        # w_bd[l, i*K+a, j*K+b] = (i==j) * W[l, a, b]  -> independent per folded row.
        w_bd = jnp.einsum("ij,lab->liajb", eye, weights_t).reshape(L, Kp, Kp)
        b_p = jnp.tile(biases, (1, fold))                       # (L, Kp)
    else:
        fold = 1
        Kp = _round_up(K, _LANES)
        w_bd = jnp.pad(weights_t, ((0, 0), (0, Kp - K), (0, Kp - K)))
        b_p = jnp.pad(biases, ((0, 0), (0, Kp - K)))
    return CrossParams(w_bd.astype(matmul_dtype), b_p.astype(jnp.float32), K, fold)


def _cross_model_kernel(x_ref, wt_ref, b_ref, o_ref, *, n_layers):
    """One grid step pushes a (TB, Kp) batch tile through all cross layers."""
    x_raw = x_ref[...]                       # (TB, Kp) f32 — original input, fixed
    feat = x_raw                             # running feature, f32
    b_all = b_ref[...]                       # (L, Kp) f32
    mxu_dtype = wt_ref.dtype                 # bf16 by default, or f32

    for l in range(n_layers):                # n_layers is a small static constant
        w_l = wt_ref[l]                      # (Kp, Kp), (in, out) layout
        cross = jnp.dot(feat.astype(mxu_dtype), w_l,
                        preferred_element_type=jnp.float32)
        cross = cross + b_all[l:l + 1, :]    # (1, Kp) broadcast over sublanes
        feat = x_raw * cross + feat          # elementwise update stays f32

    o_ref[...] = feat.astype(o_ref.dtype)    # lane-dense (Kp multiple of 128) store


def cross_model_forward(feature_all, params: CrossParams, *,
                        block_b=2048, min_grid_steps=2):
    """feature_all: (B, K) f32. params: output of prepare_cross_params (built once)."""
    B, K = feature_all.shape
    assert K == params.K, "feature width does not match packed params"
    L, Kp, _ = params.w_packed.shape
    fold = params.fold

    # --- Activation layout: fold batch rows into lanes (or pad lanes as fallback). ---
    if fold > 1:
        rows = pl.cdiv(B, fold)
        b_fold = rows * fold
        x = feature_all
        if b_fold != B:
            # Zero rows are invariant under the recurrence (x_raw=0 => feat stays 0),
            # and the block-diagonal weights keep folded chunks independent.
            x = jnp.pad(x, ((0, b_fold - B), (0, 0)))
        x = x.reshape(rows, Kp)
    else:
        rows = B
        x = feature_all if Kp == K else jnp.pad(feature_all, ((0, 0), (0, Kp - K)))

    # --- Batch tile: as large as block_b allows, but keep >= min_grid_steps steps so
    #     the grid shards across v7x's two TensorCores and tiles get pipelined. ---
    tb_budget = _round_up(max(min(block_b, rows), 1), _SUBLANES)
    tb_steps = _round_up(pl.cdiv(rows, min_grid_steps), _SUBLANES)
    TB = max(_SUBLANES, min(tb_budget, tb_steps))
    Bp = _round_up(rows, TB)
    if Bp != rows:
        x = jnp.pad(x, ((0, Bp - rows), (0, 0)))

    kernel = functools.partial(_cross_model_kernel, n_layers=L)
    out_p = pl.pallas_call(
        kernel,
        out_shape=jax.ShapeDtypeStruct((Bp, Kp), feature_all.dtype),
        grid_spec=pltpu.PrefetchScalarGridSpec(
            num_scalar_prefetch=0,
            grid=(Bp // TB,),
            in_specs=[
                pl.BlockSpec((TB, Kp), lambda i: (i, 0)),        # batch tile (pipelined)
                pl.BlockSpec((L, Kp, Kp), lambda i: (0, 0, 0)),  # stacked W (resident)
                pl.BlockSpec((L, Kp), lambda i: (0, 0)),         # stacked biases (resident)
            ],
            out_specs=pl.BlockSpec((TB, Kp), lambda i: (i, 0)),
        ),
        compiler_params=pltpu.CompilerParams(
            dimension_semantics=("parallel",),   # megacore sharding on v7x
        ),
        input_output_aliases={0: 0},             # reuse activation HBM buffer
    )(x, params.w_packed, params.b_packed)

    # --- Unfold / unpad back to (B, K). ---
    if fold > 1:
        return out_p[:rows].reshape(rows * fold, K)[:B]
    return out_p[:B, :K]


def cross_model_reference(feature_all, weights_t, biases):
    """Pure-JAX reference mirroring the PyTorch forward."""
    x_raw = feature_all
    feat = feature_all
    for l in range(weights_t.shape[0]):
        cross = feat @ weights_t[l] + biases[l][None, :]
        feat = x_raw * cross + feat
    return feat


if __name__ == "__main__":
    # Shapes consistent with the module: batch=8, K=32, cross_num=3.
    B, K, L = 8, 32, 3

    key = jax.random.PRNGKey(0)
    k_x, k_w, k_b, k_x2, k_w3, k_b3, k_x3 = jax.random.split(key, 7)

    feature_all = jax.random.normal(k_x, (B, K), dtype=jnp.float32)

    # nn.Linear-style init; PyTorch Linear weight is (out, in) -> store (in, out).
    bound = 1.0 / (K ** 0.5)
    w_torch = jax.random.uniform(k_w, (L, K, K), jnp.float32, -bound, bound)
    weights_t = jnp.transpose(w_torch, (0, 2, 1))      # (L, K_in, K_out)
    biases = jax.random.uniform(k_b, (L, K), jnp.float32, -bound, bound)

    ref = cross_model_reference(feature_all, weights_t, biases)

    # f32-operand path (exact vs reference); exercises small-K lane folding (fold=4).
    params_f32 = prepare_cross_params(weights_t, biases, matmul_dtype=jnp.float32)
    out = jax.block_until_ready(cross_model_forward(feature_all, params_f32))
    assert out.shape == (B, K)
    assert jnp.allclose(out, ref, atol=1e-5, rtol=1e-5)

    # Default bf16-operand MXU path (all generations): f32 accumulation, loose tol.
    params_bf16 = prepare_cross_params(weights_t, biases)
    out_bf16 = jax.block_until_ready(cross_model_forward(feature_all, params_bf16))
    assert jnp.allclose(out_bf16, ref, atol=5e-2, rtol=5e-2)

    # Multi-step tiled grid + non-divisible batch (fold remainder + row padding).
    B2 = 50
    feature_all2 = jax.random.normal(k_x2, (B2, K), dtype=jnp.float32)
    out2 = jax.block_until_ready(
        cross_model_forward(feature_all2, params_f32, block_b=16))
    ref2 = cross_model_reference(feature_all2, weights_t, biases)
    assert out2.shape == (B2, K)
    assert jnp.allclose(out2, ref2, atol=1e-5, rtol=1e-5)

    # Fallback path: K does not divide 128 -> lane padding instead of folding.
    B3, K3, L3 = 24, 160, 2
    bound3 = 1.0 / (K3 ** 0.5)
    w3 = jax.random.uniform(k_w3, (L3, K3, K3), jnp.float32, -bound3, bound3)
    weights_t3 = jnp.transpose(w3, (0, 2, 1))
    biases3 = jax.random.uniform(k_b3, (L3, K3), jnp.float32, -bound3, bound3)
    feature_all3 = jax.random.normal(k_x3, (B3, K3), dtype=jnp.float32)
    params3 = prepare_cross_params(weights_t3, biases3, matmul_dtype=jnp.float32)
    out3 = jax.block_until_ready(cross_model_forward(feature_all3, params3))
    ref3 = cross_model_reference(feature_all3, weights_t3, biases3)
    assert out3.shape == (B3, K3)
    assert jnp.allclose(out3, ref3, atol=1e-5, rtol=1e-5)

    print("KERNEL_OK")
</pallas_src>

<mosaic_0001>
module attributes {stable_mosaic.version = 11 : i64} {
  func.func @_cross_model_kernel(%arg0: i32, %arg1: memref<8x128xf32, #tpu.memory_space<vmem>>, %arg2: memref<3x128x128xf32, #tpu.memory_space<vmem>>, %arg3: memref<3x128xf32, #tpu.memory_space<vmem>>, %arg4: memref<8x128xf32, #tpu.memory_space<vmem>>) attributes {dimension_semantics = [#tpu.dimension_semantics<parallel>], iteration_bounds = array<i64: 1>, scalar_prefetch = 0 : i64, scratch_operands = 0 : i64, tpu.core_type = #tpu.core_type<tc>, window_params = [{transform_indices = @transform_0, window_bounds = array<i64: 8, 128>}, {pipeline_mode = #tpu.pipeline_mode<synchronous>, transform_indices = @transform_1, window_bounds = array<i64: 3, 128, 128>}, {pipeline_mode = #tpu.pipeline_mode<synchronous>, transform_indices = @transform_2, window_bounds = array<i64: 3, 128>}, {transform_indices = @transform_3, window_bounds = array<i64: 8, 128>}]} {
    %c0 = arith.constant 0 : index
    %c0_0 = arith.constant 0 : index
    %0 = vector.load %arg1[%c0, %c0_0] : memref<8x128xf32, #tpu.memory_space<vmem>>, vector<8x128xf32>
    %c0_1 = arith.constant 0 : index
    %c0_2 = arith.constant 0 : index
    %1 = vector.load %arg3[%c0_1, %c0_2] : memref<3x128xf32, #tpu.memory_space<vmem>>, vector<3x128xf32>
    %c0_3 = arith.constant 0 : index
    %c0_4 = arith.constant 0 : index
    %c0_5 = arith.constant 0 : index
    %2 = vector.load %arg2[%c0_3, %c0_4, %c0_5] : memref<3x128x128xf32, #tpu.memory_space<vmem>>, vector<1x128x128xf32>
    %3 = vector.shape_cast %2 : vector<1x128x128xf32> to vector<128x128xf32>
    %cst = arith.constant dense<0.000000e+00> : vector<8x128xf32>
    %4 = tpu.matmul %0, %3, %cst {dimension_numbers = #tpu.dot_dimension_numbers<[1], [0], [0], [1], [0, 0, 1, 1], [], []>} : vector<8x128xf32>, vector<128x128xf32>, vector<8x128xf32> -> vector<8x128xf32>
    %5 = vector.extract_strided_slice %1 {offsets = [0, 0], sizes = [1, 128], strides = [1, 1]} : vector<3x128xf32> to vector<1x128xf32>
    %6 = vector.broadcast %5 : vector<1x128xf32> to vector<8x128xf32>
    %7 = arith.addf %4, %6 : vector<8x128xf32>
    %8 = arith.mulf %0, %7 : vector<8x128xf32>
    %9 = arith.addf %8, %0 : vector<8x128xf32>
    %c1 = arith.constant 1 : index
    %c0_6 = arith.constant 0 : index
    %c0_7 = arith.constant 0 : index
    %10 = vector.load %arg2[%c1, %c0_6, %c0_7] : memref<3x128x128xf32, #tpu.memory_space<vmem>>, vector<1x128x128xf32>
    %11 = vector.shape_cast %10 : vector<1x128x128xf32> to vector<128x128xf32>
    %cst_8 = arith.constant dense<0.000000e+00> : vector<8x128xf32>
    %12 = tpu.matmul %9, %11, %cst_8 {dimension_numbers = #tpu.dot_dimension_numbers<[1], [0], [0], [1], [0, 0, 1, 1], [], []>} : vector<8x128xf32>, vector<128x128xf32>, vector<8x128xf32> -> vector<8x128xf32>
    %13 = vector.extract_strided_slice %1 {offsets = [1, 0], sizes = [1, 128], strides = [1, 1]} : vector<3x128xf32> to vector<1x128xf32>
    %14 = vector.broadcast %13 : vector<1x128xf32> to vector<8x128xf32>
    %15 = arith.addf %12, %14 : vector<8x128xf32>
    %16 = arith.mulf %0, %15 : vector<8x128xf32>
    %17 = arith.addf %16, %9 : vector<8x128xf32>
    %c2 = arith.constant 2 : index
    %c0_9 = arith.constant 0 : index
    %c0_10 = arith.constant 0 : index
    %18 = vector.load %arg2[%c2, %c0_9, %c0_10] : memref<3x128x128xf32, #tpu.memory_space<vmem>>, vector<1x128x128xf32>
    %19 = vector.shape_cast %18 : vector<1x128x128xf32> to vector<128x128xf32>
    %cst_11 = arith.constant dense<0.000000e+00> : vector<8x128xf32>
    %20 = tpu.matmul %17, %19, %cst_11 {dimension_numbers = #tpu.dot_dimension_numbers<[1], [0], [0], [1], [0, 0, 1, 1], [], []>} : vector<8x128xf32>, vector<128x128xf32>, vector<8x128xf32> -> vector<8x128xf32>
    %21 = vector.extract_strided_slice %1 {offsets = [2, 0], sizes = [1, 128], strides = [1, 1]} : vector<3x128xf32> to vector<1x128xf32>
    %22 = vector.broadcast %21 : vector<1x128xf32> to vector<8x128xf32>
    %23 = arith.addf %20, %22 : vector<8x128xf32>
    %24 = arith.mulf %0, %23 : vector<8x128xf32>
    %25 = arith.addf %24, %17 : vector<8x128xf32>
    %c0_12 = arith.constant 0 : index
    %c0_13 = arith.constant 0 : index
    %26 = vector.load %arg4[%c0_12, %c0_13] : memref<8x128xf32, #tpu.memory_space<vmem>>, vector<8x128xf32>
    tpu.vector_store %arg4[%c0_12, %c0_13], %25 {strides = array<i32>} : memref<8x128xf32, #tpu.memory_space<vmem>>, vector<8x128xf32>,
    return
  }
  func.func @transform_0(%arg0: i32) -> (i32, i32) {
    %c0_i32 = arith.constant 0 : i32
    %c0_i32_0 = arith.constant 0 : i32
    return %arg0, %c0_i32 : i32, i32
  }
  func.func @transform_1(%arg0: i32) -> (i32, i32, i32) {
    %c0_i32 = arith.constant 0 : i32
    %c0_i32_0 = arith.constant 0 : i32
    %c0_i32_1 = arith.constant 0 : i32
    %c0_i32_2 = arith.constant 0 : i32
    return %c0_i32, %c0_i32_0, %c0_i32_1 : i32, i32, i32
  }
  func.func @transform_2(%arg0: i32) -> (i32, i32) {
    %c0_i32 = arith.constant 0 : i32
    %c0_i32_0 = arith.constant 0 : i32
    %c0_i32_1 = arith.constant 0 : i32
    return %c0_i32, %c0_i32_0 : i32, i32
  }
  func.func @transform_3(%arg0: i32) -> (i32, i32) {
    %c0_i32 = arith.constant 0 : i32
    %c0_i32_0 = arith.constant 0 : i32
    return %arg0, %c0_i32 : i32, i32
  }
}

</mosaic_0001>

<llo_original>
// kernel: tpu_custom_call.1
$region0: #{tpu_custom_call.1}
  #allocation0 [shape = 'u32[]', space=smem, size = 0x4, offset = 0x4, fixed_abs, tag = 'smem constant byte address 0x4 - core index']
  #allocation1 [shape = 'u32[72,128]{1,0:T(1,128)}', space=vmem, size = 0x9000, scoped, tag = 'internal scratch']
  %s0 = inlined_call_operand.hbm [shape: f32[8,128], index: 0, kind: input, shape index: {}, may-alias: {0,3}]
  %s1 = inlined_call_operand.hbm [shape: f32[3,128,128], index: 1, kind: input, shape index: {}]
  %s2 = inlined_call_operand.vmem [shape: f32[3,128], index: 2, kind: input, shape index: {}]
  %s3 = inlined_call_operand.hbm [shape: f32[8,128], index: 3, kind: output, shape index: {}, may-alias: {0,3}]
  %s4 = sld [smem:[#allocation0]]
  $region30: #{tpu_custom_call.1} parent=0
    _
  %s6 = ssub.s32 1, %s4
  %s7 = scalar_select 0, %s6, %s4
  $region1: #{tpu_custom_call.1} parent=0
    #allocation2 [shape = 'u8[4096]{0}', space=vmem, size = 0x1000, scoped, tag = 'input window, operand 0, single buffered']
    #allocation3 [shape = 's32[1]{0}', space=sflag, size = 0x4, scoped, tag = 'scoped memory for tpu_custom_call.1']
    #allocation4 [shape = 's32[1]{0}', space=sflag, size = 0x4, scoped, tag = 'scoped memory for tpu_custom_call.1']
    #allocation5 [shape = 'u8[196608]{0}', space=vmem, size = 0x30000, scoped, tag = 'input window, operand 1, single buffered']
    #allocation6 [shape = 's32[1]{0}', space=sflag, size = 0x4, scoped, tag = 'scoped memory for tpu_custom_call.1']
    #allocation7 [shape = 'u8[4096]{0}', space=vmem, size = 0x1000, scoped, tag = 'output window, operand 0, single buffered']
    %8 = vsyncpa [#allocation3], 0
    %9 = vsyncpa [#allocation6], 0
    %10 = vsyncpa [#allocation4], 0
    // Predicated region
    $region2: #{tpu_custom_call.1} parent=1 // pred_check
      _
    $region3: #{tpu_custom_call.1} parent=1 // pred_check_branch
      %12 = sbr.rel (0) target = $region5
    $region4: #{tpu_custom_call.1} parent=1 // pred_region
      %14 = vsyncadd [#allocation3], 0
      %s16 = sshll.u32 %s0, 4
      %s17 = int_to_ptr.hbm [resolvable:$true] %s16
      %s18 = sshll.u32 [#allocation2], 4
      %s19 = int_to_ptr.vmem [resolvable:$true] %s18
      %21 = dma.hbm_to_vmem [thread:$0]  %s17, 128, %s19, [#allocation3]
    $region5: #{tpu_custom_call.1} parent=1 // pred_fallthru
      _
    // Predicated region
    $region6: #{tpu_custom_call.1} parent=1 // pred_check
      _
    $region7: #{tpu_custom_call.1} parent=1 // pred_check_branch
      %23 = sbr.rel (0) target = $region9
    $region8: #{tpu_custom_call.1} parent=1 // pred_region
      %25 = vsyncadd [#allocation6], 0
      %s26 = sshll.u32 %s1, 4
      %s27 = int_to_ptr.hbm [resolvable:$true] %s26
      %s28 = sshll.u32 [#allocation5], 4
      %s29 = int_to_ptr.vmem [resolvable:$true] %s28
      %34 = dma.hbm_to_vmem [thread:$0]  %s27, 6144, %s29, [#allocation6], 128, 128, 8
    $region9: #{tpu_custom_call.1} parent=1 // pred_fallthru
      _
    // Predicated region
    $region10: #{tpu_custom_call.1} parent=1 // pred_check
      _
    $region11: #{tpu_custom_call.1} parent=1 // pred_check_branch
      %36 = sbr.rel (0) target = $region13
    $region12: #{tpu_custom_call.1} parent=1 // pred_region
      _
    $region13: #{tpu_custom_call.1} parent=1 // pred_fallthru
      _
    // Predicated region
    $region14: #{tpu_custom_call.1} parent=1 // pred_check
      _
    $region15: #{tpu_custom_call.1} parent=1 // pred_check_branch
      %38 = sbr.rel (0) target = $region17
    $region16: #{tpu_custom_call.1} parent=1 // pred_region
      %40 = dma.done [#allocation3], 128
    $region17: #{tpu_custom_call.1} parent=1 // pred_fallthru
      _
    // Predicated region
    $region18: #{tpu_custom_call.1} parent=1 // pred_check
      _
    $region19: #{tpu_custom_call.1} parent=1 // pred_check_branch
      %42 = sbr.rel (0) target = $region21
    $region20: #{tpu_custom_call.1} parent=1 // pred_region
      %44 = dma.done [#allocation6], 6144
    $region21: #{tpu_custom_call.1} parent=1 // pred_fallthru
      _
    %v45 = vld [vmem:[#allocation2] sm:$0xff]
    %v46 = vld [vmem:[%s2] sm:$0x7]
    %v47 = vld [vmem:[#allocation5] sm:$0xff]
    %v48 = vld [vmem:[#allocation5 + $0x8] sm:$0xff]
    %v49 = vld [vmem:[#allocation5 + $0x10] sm:$0xff]
    %v50 = vld [vmem:[#allocation5 + $0x18] sm:$0xff]
    %v51 = vld [vmem:[#allocation5 + $0x20] sm:$0xff]
    %v52 = vld [vmem:[#allocation5 + $0x28] sm:$0xff]
    %v53 = vld [vmem:[#allocation5 + $0x30] sm:$0xff]
    %v54 = vld [vmem:[#allocation5 + $0x38] sm:$0xff]
    %v55 = vld [vmem:[#allocation5 + $0x40] sm:$0xff]
    %v56 = vld [vmem:[#allocation5 + $0x48] sm:$0xff]
    %v57 = vld [vmem:[#allocation5 + $0x50] sm:$0xff]
    %v58 = vld [vmem:[#allocation5 + $0x58] sm:$0xff]
    %v59 = vld [vmem:[#allocation5 + $0x60] sm:$0xff]
    %v60 = vld [vmem:[#allocation5 + $0x68] sm:$0xff]
    %v61 = vld [vmem:[#allocation5 + $0x70] sm:$0xff]
    %v62 = vld [vmem:[#allocation5 + $0x78] sm:$0xff]
    %v63 = vperm.slane %v46, 0
    %64 = vmatpush.msra.mxu0 %v62
    %65 = vmatpush.msra.mxu0 %v61
    %66 = vmatpush.msra.mxu0 %v60
    %67 = vmatpush.msra.mxu0 %v59
    %68 = vmatpush.msra.mxu0 %v58
    %69 = vmatpush.msra.mxu0 %v57
    %70 = vmatpush.msra.mxu0 %v56
    %71 = vmatpush.msra.mxu0 %v55
    %72 = vmatpush.msra.mxu0 %v54
    %73 = vmatpush.msra.mxu0 %v53
    %74 = vmatpush.msra.mxu0 %v52
    %75 = vmatpush.msra.mxu0 %v51
    %76 = vmatpush.msra.mxu0 %v50
    %77 = vmatpush.msra.mxu0 %v49
    %78 = vmatpush.msra.mxu0 %v48
    %79 = vmatpush.msra.mxu0 %v47
    %80 = vmatmul.f32.gmra.mxu0 %v45
    %v81 = vpop.f32.mrf.mxu0
    %v82 = vadd.f32 %v63, %v81
    %83 = vdwg.mxu0
    %v84 = vmul.f32 %v45, %v82
    %v85 = vadd.f32 %v84, %v45
    %s86 = scalar_lea.vmem [#allocation5], 128
    %v87 = vld [vmem:[%s86] sm:$0xff]
    %v88 = vld [vmem:[%s86 + $0x8] sm:$0xff]
    %v89 = vld [vmem:[%s86 + $0x10] sm:$0xff]
    %v90 = vld [vmem:[%s86 + $0x18] sm:$0xff]
    %v91 = vld [vmem:[%s86 + $0x20] sm:$0xff]
    %v92 = vld [vmem:[%s86 + $0x28] sm:$0xff]
    %v93 = vld [vmem:[%s86 + $0x30] sm:$0xff]
    %v94 = vld [vmem:[%s86 + $0x38] sm:$0xff]
    %v95 = vld [vmem:[%s86 + $0x40] sm:$0xff]
    %v96 = vld [vmem:[%s86 + $0x48] sm:$0xff]
    %v97 = vld [vmem:[%s86 + $0x50] sm:$0xff]
    %v98 = vld [vmem:[%s86 + $0x58] sm:$0xff]
    %v99 = vld [vmem:[%s86 + $0x60] sm:$0xff]
    %v100 = vld [vmem:[%s86 + $0x68] sm:$0xff]
    %v101 = vld [vmem:[%s86 + $0x70] sm:$0xff]
    %v102 = vld [vmem:[%s86 + $0x78] sm:$0xff]
    %v103 = vperm.slane %v46, 1
    %104 = vmatpush.msra.mxu0 %v102
    %105 = vmatpush.msra.mxu0 %v101
    %106 = vmatpush.msra.mxu0 %v100
    %107 = vmatpush.msra.mxu0 %v99
    %108 = vmatpush.msra.mxu0 %v98
    %109 = vmatpush.msra.mxu0 %v97
    %110 = vmatpush.msra.mxu0 %v96
    %111 = vmatpush.msra.mxu0 %v95
    %112 = vmatpush.msra.mxu0 %v94
    %113 = vmatpush.msra.mxu0 %v93
    %114 = vmatpush.msra.mxu0 %v92
    %115 = vmatpush.msra.mxu0 %v91
    %116 = vmatpush.msra.mxu0 %v90
    %117 = vmatpush.msra.mxu0 %v89
    %118 = vmatpush.msra.mxu0 %v88
    %119 = vmatpush.msra.mxu0 %v87
    %120 = vmatmul.f32.gmra.mxu0 %v85
    %v121 = vpop.f32.mrf.mxu0
    %v122 = vadd.f32 %v103, %v121
    %123 = vdwg.mxu0
    %v124 = vmul.f32 %v45, %v122
    %v125 = vadd.f32 %v124, %v85
    %s126 = scalar_lea.vmem [#allocation5], 256
    %v127 = vld [vmem:[%s126] sm:$0xff]
    %v128 = vld [vmem:[%s126 + $0x8] sm:$0xff]
    %v129 = vld [vmem:[%s126 + $0x10] sm:$0xff]
    %v130 = vld [vmem:[%s126 + $0x18] sm:$0xff]
    %v131 = vld [vmem:[%s126 + $0x20] sm:$0xff]
    %v132 = vld [vmem:[%s126 + $0x28] sm:$0xff]
    %v133 = vld [vmem:[%s126 + $0x30] sm:$0xff]
    %v134 = vld [vmem:[%s126 + $0x38] sm:$0xff]
    %v135 = vld [vmem:[%s126 + $0x40] sm:$0xff]
    %v136 = vld [vmem:[%s126 + $0x48] sm:$0xff]
    %v137 = vld [vmem:[%s126 + $0x50] sm:$0xff]
    %v138 = vld [vmem:[%s126 + $0x58] sm:$0xff]
    %v139 = vld [vmem:[%s126 + $0x60] sm:$0xff]
    %v140 = vld [vmem:[%s126 + $0x68] sm:$0xff]
    %v141 = vld [vmem:[%s126 + $0x70] sm:$0xff]
    %v142 = vld [vmem:[%s126 + $0x78] sm:$0xff]
    %v143 = vperm.slane %v46, 2
    %144 = vmatpush.msra.mxu0 %v142
    %145 = vmatpush.msra.mxu0 %v141
    %146 = vmatpush.msra.mxu0 %v140
    %147 = vmatpush.msra.mxu0 %v139
    %148 = vmatpush.msra.mxu0 %v138
    %149 = vmatpush.msra.mxu0 %v137
    %150 = vmatpush.msra.mxu0 %v136
    %151 = vmatpush.msra.mxu0 %v135
    %152 = vmatpush.msra.mxu0 %v134
    %153 = vmatpush.msra.mxu0 %v133
    %154 = vmatpush.msra.mxu0 %v132
    %155 = vmatpush.msra.mxu0 %v131
    %156 = vmatpush.msra.mxu0 %v130
    %157 = vmatpush.msra.mxu0 %v129
    %158 = vmatpush.msra.mxu0 %v128
    %159 = vmatpush.msra.mxu0 %v127
    %160 = vmatmul.f32.gmra.mxu0 %v125
    %v161 = vpop.f32.mrf.mxu0
    %v162 = vadd.f32 %v143, %v161
    %163 = vdwg.mxu0
    %v164 = vmul.f32 %v45, %v162
    %v165 = vadd.f32 %v164, %v125
    %166 = vst [vmem:[#allocation7] sm:$0xff] %v165
    // Predicated region
    $region22: #{tpu_custom_call.1} parent=1 // pred_check
      _
    $region23: #{tpu_custom_call.1} parent=1 // pred_check_branch
      %168 = sbr.rel (0) target = $region25
    $region24: #{tpu_custom_call.1} parent=1 // pred_region
      %170 = vsyncadd [#allocation4], 0
      %s172 = sshll.u32 [#allocation7], 4
      %s173 = int_to_ptr.vmem [resolvable:$true] %s172
      %s174 = sshll.u32 %s3, 4
      %s175 = int_to_ptr.hbm [resolvable:$true] %s174
      %177 = dma.vmem_to_hbm [thread:$0]  %s173, 128, %s175, [#allocation4]
    $region25: #{tpu_custom_call.1} parent=1 // pred_fallthru
      _
    // Predicated region
    $region26: #{tpu_custom_call.1} parent=1 // pred_check
      _
    $region27: #{tpu_custom_call.1} parent=1 // pred_check_branch
      %179 = sbr.rel (0) target = $region29
    $region28: #{tpu_custom_call.1} parent=1 // pred_region
      %181 = dma.done [#allocation4], 128
    $region29: #{tpu_custom_call.1} parent=1 // pred_fallthru
      _
    %182 = vsyncpa [#allocation3], 1
    %183 = vsyncpa [#allocation6], 1
    %184 = vsyncpa [#allocation4], 1

</llo_original>
